<compile_context>
chip_gen: v6e
topology: v6e:2x2x1
jax: 0.10.0
libtpu: 0.0.40
codegen_flags: <defaults>
</compile_context>

<pallas_src>
import functools

import jax
import jax.numpy as jnp
from jax import lax
from jax.experimental import pallas as pl
from jax.experimental.pallas import tpu as pltpu

_LANES = 128
_NEG_INF = -1e30                 # large finite "minus infinity" (no inf-inf NaNs)
_LOG2_E = 1.4426950408889634


def _flash_attend_kernel(q_ref, k_ref, v_ref, o_ref,
                         m_sc, l_sc, acc_sc, qs_sc,
                         *, scale_log2e, nk_valid, needs_kv_mask):
    """One (head-group, q-tile, kv-tile) flash-attention step.

    q_ref: (G, tq, D)   k_ref / v_ref: (G, tk, D)   o_ref: (G, tq, D)
    m_sc / l_sc: (G, tq, 128) f32 (lane-replicated running max / denom)
    acc_sc: (G, tq, D) f32 running numerator
    qs_sc: (G, tq, D) compute dtype, Q pre-scaled by scale*log2(e) (written once per q tile)
    """
    kv = pl.program_id(2)
    compute_dtype = qs_sc.dtype
    D = acc_sc.shape[-1]

    @pl.when(kv == 0)
    def _init():
        m_sc[...] = jnp.full(m_sc.shape, _NEG_INF, dtype=m_sc.dtype)
        l_sc[...] = jnp.zeros(l_sc.shape, dtype=l_sc.dtype)
        acc_sc[...] = jnp.zeros(acc_sc.shape, dtype=acc_sc.dtype)
        # Q block index is constant along the kv axis, so the tile is resident:
        # fold scale*log2(e) into it once instead of every kv step.
        qs_sc[...] = (q_ref[...].astype(jnp.float32) * scale_log2e).astype(compute_dtype)

    q = qs_sc[...]                                       # (G, tq, D)
    k = k_ref[...]                                       # (G, tk, D)
    if k.dtype != compute_dtype:
        k = k.astype(compute_dtype)
    v = v_ref[...]                                       # (G, tk, D)

    # log2-scaled logits: s = (scale*log2e) * q @ k^T, contracting D, batched over G.
    s = lax.dot_general(
        q, k,
        dimension_numbers=(((2,), (2,)), ((0,), (0,))),
        preferred_element_type=jnp.float32,
    )                                                    # (G, tq, tk) f32

    if needs_kv_mask:
        tk = s.shape[-1]
        col = lax.broadcasted_iota(jnp.int32, (1, 1, tk), 2) + kv * tk
        s = jnp.where(col < nk_valid, s, _NEG_INF)

    # Online softmax in base 2 (exp2 instead of exp(x) = exp2(x * log2e)).
    m_prev = m_sc[...]                                   # (G, tq, 128)
    m_new = jnp.maximum(m_prev, jnp.max(s, axis=-1, keepdims=True))
    alpha = jnp.exp2(m_prev - m_new)                     # rescale old statistics
    p = jnp.exp2(s - m_new[..., :1])                     # (G, tq, tk)

    l_sc[...] = alpha * l_sc[...] + jnp.sum(p, axis=-1, keepdims=True)

    p_mxu = p if p.dtype == compute_dtype else p.astype(compute_dtype)
    v_mxu = v if v.dtype == compute_dtype else v.astype(compute_dtype)
    pv = lax.dot_general(
        p_mxu, v_mxu,
        dimension_numbers=(((2,), (1,)), ((0,), (0,))),
        preferred_element_type=jnp.float32,
    )                                                    # (G, tq, D) f32

    alpha_d = alpha[..., :D] if D <= alpha.shape[-1] else alpha[..., :1]
    acc_sc[...] = alpha_d * acc_sc[...] + pv
    m_sc[...] = m_new

    @pl.when(kv == pl.num_programs(2) - 1)
    def _finalize():
        # Normalize the O(N*D) accumulator (not the N x N attention matrix).
        l = l_sc[...]
        inv = pl.reciprocal(l, approx=True)              # EUP slot, nearly free
        inv = inv * (2.0 - l * inv)                      # one Newton step -> ~f32 exact
        inv_d = inv[..., :D] if D <= inv.shape[-1] else inv[..., :1]
        o_ref[...] = (acc_sc[...] * inv_d).astype(o_ref.dtype)


def _round_up(x, m):
    return ((x + m - 1) // m) * m


def _pick_tile(n, target):
    """Tile size (multiple of 8, <= ~target) minimizing padding of n."""
    n8 = _round_up(n, 8)
    if n8 <= target:
        return n8
    num_tiles = -(-n // target)
    return _round_up(-(-n // num_tiles), 8)


def _pick_head_group(bh, d, lane=_LANES):
    """Smallest divisor g of bh with g*d >= lane (amortize overhead, widen DMAs
    for small head_dim), capped so g*d stays modest for VMEM."""
    best = 1
    for g in range(1, bh + 1):
        if bh % g:
            continue
        if g * d > 4 * lane:
            break
        best = g
        if g * d >= lane:
            break
    return best


def attend(q, k, v, scale=None, *, q_tile=512, kv_tile=1024, mxu_dtype=None):
    """Pallas equivalent of Attend.forward (flash=False, dropout=0.0).

    q, k, v: (B, H, N, D) arrays.  Returns (B, H, N, D).
    mxu_dtype: optional operand dtype for the two matmuls (e.g. jnp.bfloat16 for
      f32 inputs on v5e); default uses the input dtype.
    """
    B, H, Nq, D = q.shape
    _, _, Nk, _ = k.shape
    assert k.shape == (B, H, Nk, D) and v.shape == (B, H, Nk, D)
    if scale is None:
        scale = D ** (-0.5)
    scale = float(scale)
    if mxu_dtype is None:
        mxu_dtype = q.dtype
    mxu_dtype = jnp.dtype(mxu_dtype)

    BH = B * H
    # Leading-dim merge is layout-preserving (zero-copy) under XLA.
    qf = q.reshape(BH, Nq, D)
    kf = k.reshape(BH, Nk, D)
    vf = v.reshape(BH, Nk, D)

    G = _pick_head_group(BH, D)
    # Keep G*tq roughly constant so the f32 (G, tq, tk) temporaries stay bounded.
    tq_target = q_tile if G <= 2 else max(128, (2 * q_tile) // G)
    tq = _pick_tile(Nq, tq_target)
    tk = _pick_tile(Nk, kv_tile)

    # Make sure there are >= 2 parallel grid steps so both v7x TensorCores get work.
    def _parallel_steps(g, t):
        return (BH // g) * (-(-Nq // t))
    while _parallel_steps(G, tq) < 2 and tq > 8:
        tq = max(8, _round_up(tq // 2, 8))
    if _parallel_steps(G, tq) < 2 and G > 1:
        for d_ in range(G - 1, 0, -1):
            if BH % d_ == 0:
                G = d_
                break

    Nq_pad = _round_up(Nq, tq)
    Nk_pad = _round_up(Nk, tk)
    if Nq_pad != Nq:
        qf = jnp.pad(qf, ((0, 0), (0, Nq_pad - Nq), (0, 0)))
    if Nk_pad != Nk:
        kf = jnp.pad(kf, ((0, 0), (0, Nk_pad - Nk), (0, 0)))
        vf = jnp.pad(vf, ((0, 0), (0, Nk_pad - Nk), (0, 0)))
    needs_kv_mask = Nk_pad != Nk

    grid = (BH // G, Nq_pad // tq, Nk_pad // tk)

    # VMEM budget from the tile math, clamped against the chip's physical VMEM
    # (v7x only has 64 MiB per TensorCore).
    in_b = q.dtype.itemsize
    cd_b = mxu_dtype.itemsize
    est = (2 * (G * tq * D + 2 * G * tk * D) * in_b      # q, k, v double-buffered
           + 2 * G * tq * D * in_b                        # o double-buffered
           + G * tq * D * cd_b                            # pre-scaled Q scratch
           + G * tq * (D + 2 * _LANES) * 4                # acc + widened m/l scratch
           + 3 * G * tq * tk * 4)                         # s / p f32 temporaries
    try:
        phys_vmem = int(pltpu.get_tpu_info().vmem_capacity_bytes)
    except Exception:
        phys_vmem = 64 * 1024 * 1024                      # conservative v7x floor
    vmem_limit = min(max(32 * 1024 * 1024, 2 * est), phys_vmem - 8 * 1024 * 1024)
    vmem_limit = int(max(vmem_limit, 16 * 1024 * 1024))

    kernel = functools.partial(
        _flash_attend_kernel,
        scale_log2e=scale * _LOG2_E,
        nk_valid=Nk,
        needs_kv_mask=needs_kv_mask,
    )

    out = pl.pallas_call(
        kernel,
        out_shape=jax.ShapeDtypeStruct((BH, Nq_pad, D), q.dtype),
        grid_spec=pltpu.PrefetchScalarGridSpec(
            num_scalar_prefetch=0,
            grid=grid,
            in_specs=[
                pl.BlockSpec((G, tq, D), lambda g, qi, ki: (g, qi, 0)),
                pl.BlockSpec((G, tk, D), lambda g, qi, ki: (g, ki, 0)),
                pl.BlockSpec((G, tk, D), lambda g, qi, ki: (g, ki, 0)),
            ],
            out_specs=pl.BlockSpec((G, tq, D), lambda g, qi, ki: (g, qi, 0)),
            scratch_shapes=[
                pltpu.VMEM((G, tq, _LANES), jnp.float32),   # running max m (lane-replicated)
                pltpu.VMEM((G, tq, _LANES), jnp.float32),   # running denom l
                pltpu.VMEM((G, tq, D), jnp.float32),        # running numerator acc
                pltpu.VMEM((G, tq, D), mxu_dtype),          # Q pre-scaled by scale*log2e
            ],
        ),
        compiler_params=pltpu.CompilerParams(
            dimension_semantics=("parallel", "parallel", "arbitrary"),
            vmem_limit_bytes=vmem_limit,
        ),
    )(qf, kf, vf)

    if Nq_pad != Nq:
        out = out[:, :Nq, :]
    return out.reshape(B, H, Nq, D)


def _attend_reference(q, k, v, scale=None):
    """Pure-JAX reference matching the PyTorch forward."""
    D = q.shape[-1]
    if scale is None:
        scale = D ** (-0.5)
    sim = jnp.einsum('bhid,bhjd->bhij', q, k) * scale
    attn = jax.nn.softmax(sim, axis=-1)
    return jnp.einsum('bhij,bhjd->bhid', attn, v)


if __name__ == "__main__":
    # Small shapes consistent with the module: batch=2, heads=4, seq=8, head_dim=32.
    B, H, N, D = 2, 4, 8, 32
    kq, kk, kv_ = jax.random.split(jax.random.PRNGKey(0), 3)
    q = jax.random.normal(kq, (B, H, N, D), dtype=jnp.float32)
    k = jax.random.normal(kk, (B, H, N, D), dtype=jnp.float32)
    v = jax.random.normal(kv_, (B, H, N, D), dtype=jnp.float32)

    out = jax.block_until_ready(attend(q, k, v))
    ref = _attend_reference(q, k, v)
    assert out.shape == (B, H, N, D)
    assert jnp.allclose(out, ref, atol=2e-3, rtol=2e-3), "mismatch vs reference (small)"

    # Longer sequence exercising the multi-q-tile flash path.
    B2, H2, N2, D2 = 1, 2, 1024, 64
    kq2, kk2, kv2 = jax.random.split(jax.random.PRNGKey(1), 3)
    q2 = jax.random.normal(kq2, (B2, H2, N2, D2), dtype=jnp.float32)
    k2 = jax.random.normal(kk2, (B2, H2, N2, D2), dtype=jnp.float32)
    v2 = jax.random.normal(kv2, (B2, H2, N2, D2), dtype=jnp.float32)
    out2 = jax.block_until_ready(attend(q2, k2, v2))
    ref2 = _attend_reference(q2, k2, v2)
    assert jnp.allclose(out2, ref2, atol=2e-3, rtol=2e-3), "mismatch vs reference (tiled)"

    # Awkward (non multiple-of-8) sequence length exercising padding + kv masking.
    B3, H3, N3, D3 = 1, 2, 130, 64
    kq3, kk3, kv3 = jax.random.split(jax.random.PRNGKey(2), 3)
    q3 = jax.random.normal(kq3, (B3, H3, N3, D3), dtype=jnp.float32)
    k3 = jax.random.normal(kk3, (B3, H3, N3, D3), dtype=jnp.float32)
    v3 = jax.random.normal(kv3, (B3, H3, N3, D3), dtype=jnp.float32)
    out3 = jax.block_until_ready(attend(q3, k3, v3))
    ref3 = _attend_reference(q3, k3, v3)
    assert jnp.allclose(out3, ref3, atol=2e-3, rtol=2e-3), "mismatch vs reference (padded)"

    # TODO(synk): attn_dropout is identity at eval / dropout=0.0; training-mode stochastic
    # dropout would need pltpu.prng_seed/prng_random_bits per tile and is not implemented.
    print("KERNEL_OK")
</pallas_src>

<mosaic_0001>
module attributes {stable_mosaic.version = 11 : i64} {
  func.func @_flash_attend_kernel(%arg0: i32, %arg1: i32, %arg2: i32, %arg3: memref<4x8x32xf32, #tpu.memory_space<vmem>>, %arg4: memref<4x8x32xf32, #tpu.memory_space<vmem>>, %arg5: memref<4x8x32xf32, #tpu.memory_space<vmem>>, %arg6: memref<4x8x32xf32, #tpu.memory_space<vmem>>, %arg7: memref<4x8x128xf32, #tpu.memory_space<vmem>>, %arg8: memref<4x8x128xf32, #tpu.memory_space<vmem>>, %arg9: memref<4x8x32xf32, #tpu.memory_space<vmem>>, %arg10: memref<4x8x32xf32, #tpu.memory_space<vmem>>) attributes {dimension_semantics = [#tpu.dimension_semantics<parallel>, #tpu.dimension_semantics<parallel>, #tpu.dimension_semantics<arbitrary>], iteration_bounds = array<i64: 2, 1, 1>, scalar_prefetch = 0 : i64, scratch_operands = 4 : i64, tpu.core_type = #tpu.core_type<tc>, window_params = [{transform_indices = @transform_0, window_bounds = array<i64: 4, 8, 32>}, {transform_indices = @transform_1, window_bounds = array<i64: 4, 8, 32>}, {transform_indices = @transform_2, window_bounds = array<i64: 4, 8, 32>}, {transform_indices = @transform_3, window_bounds = array<i64: 4, 8, 32>}]} {
    %c0_i32 = arith.constant 0 : i32
    %0 = arith.cmpi eq, %arg2, %c0_i32 : i32
    %1 = arith.extui %0 : i1 to i32
    %c0_i32_0 = arith.constant 0 : i32
    %2 = arith.cmpi ne, %1, %c0_i32_0 : i32
    scf.if %2 {
      %cst_32 = arith.constant -1.000000e+30 : f32
      %35 = vector.broadcast %cst_32 : f32 to vector<4x8x128xf32>
      %c0_33 = arith.constant 0 : index
      %c0_34 = arith.constant 0 : index
      %c0_35 = arith.constant 0 : index
      %36 = vector.load %arg7[%c0_33, %c0_34, %c0_35] : memref<4x8x128xf32, #tpu.memory_space<vmem>>, vector<4x8x128xf32>
      tpu.vector_store %arg7[%c0_33, %c0_34, %c0_35], %35 {strides = array<i32>} : memref<4x8x128xf32, #tpu.memory_space<vmem>>, vector<4x8x128xf32>,
      %cst_36 = arith.constant 0.000000e+00 : f32
      %37 = vector.broadcast %cst_36 : f32 to vector<4x8x128xf32>
      %c0_37 = arith.constant 0 : index
      %c0_38 = arith.constant 0 : index
      %c0_39 = arith.constant 0 : index
      %38 = vector.load %arg8[%c0_37, %c0_38, %c0_39] : memref<4x8x128xf32, #tpu.memory_space<vmem>>, vector<4x8x128xf32>
      tpu.vector_store %arg8[%c0_37, %c0_38, %c0_39], %37 {strides = array<i32>} : memref<4x8x128xf32, #tpu.memory_space<vmem>>, vector<4x8x128xf32>,
      %cst_40 = arith.constant 0.000000e+00 : f32
      %39 = vector.broadcast %cst_40 : f32 to vector<4x8x32xf32>
      %c0_41 = arith.constant 0 : index
      %c0_42 = arith.constant 0 : index
      %c0_43 = arith.constant 0 : index
      %40 = vector.load %arg9[%c0_41, %c0_42, %c0_43] : memref<4x8x32xf32, #tpu.memory_space<vmem>>, vector<4x8x32xf32>
      tpu.vector_store %arg9[%c0_41, %c0_42, %c0_43], %39 {strides = array<i32>} : memref<4x8x32xf32, #tpu.memory_space<vmem>>, vector<4x8x32xf32>,
      %c0_44 = arith.constant 0 : index
      %c0_45 = arith.constant 0 : index
      %c0_46 = arith.constant 0 : index
      %41 = vector.load %arg3[%c0_44, %c0_45, %c0_46] : memref<4x8x32xf32, #tpu.memory_space<vmem>>, vector<4x8x32xf32>
      %cst_47 = arith.constant 0.255034864 : f32
      %42 = vector.broadcast %cst_47 : f32 to vector<4x8x32xf32>
      %43 = arith.mulf %41, %42 : vector<4x8x32xf32>
      %c0_48 = arith.constant 0 : index
      %c0_49 = arith.constant 0 : index
      %c0_50 = arith.constant 0 : index
      %44 = vector.load %arg10[%c0_48, %c0_49, %c0_50] : memref<4x8x32xf32, #tpu.memory_space<vmem>>, vector<4x8x32xf32>
      tpu.vector_store %arg10[%c0_48, %c0_49, %c0_50], %43 {strides = array<i32>} : memref<4x8x32xf32, #tpu.memory_space<vmem>>, vector<4x8x32xf32>,
    } else {
    }
    %c0 = arith.constant 0 : index
    %c0_1 = arith.constant 0 : index
    %c0_2 = arith.constant 0 : index
    %3 = vector.load %arg10[%c0, %c0_1, %c0_2] : memref<4x8x32xf32, #tpu.memory_space<vmem>>, vector<4x8x32xf32>
    %c0_3 = arith.constant 0 : index
    %c0_4 = arith.constant 0 : index
    %c0_5 = arith.constant 0 : index
    %4 = vector.load %arg4[%c0_3, %c0_4, %c0_5] : memref<4x8x32xf32, #tpu.memory_space<vmem>>, vector<4x8x32xf32>
    %c0_6 = arith.constant 0 : index
    %c0_7 = arith.constant 0 : index
    %c0_8 = arith.constant 0 : index
    %5 = vector.load %arg5[%c0_6, %c0_7, %c0_8] : memref<4x8x32xf32, #tpu.memory_space<vmem>>, vector<4x8x32xf32>
    %cst = arith.constant dense<0.000000e+00> : vector<4x8x8xf32>
    %6 = tpu.matmul %3, %4, %cst {dimension_numbers = #tpu.dot_dimension_numbers<[2], [2], [1], [1], [0, 0, 0, 1, 1, 1], [0], [0]>} : vector<4x8x32xf32>, vector<4x8x32xf32>, vector<4x8x8xf32> -> vector<4x8x8xf32>
    %c0_9 = arith.constant 0 : index
    %c0_10 = arith.constant 0 : index
    %c0_11 = arith.constant 0 : index
    %7 = vector.load %arg7[%c0_9, %c0_10, %c0_11] : memref<4x8x128xf32, #tpu.memory_space<vmem>>, vector<4x8x128xf32>
    %cst_12 = arith.constant dense<0xFF800000> : vector<4x8xf32>
    %8 = vector.multi_reduction <maximumf>, %6, %cst_12 [2] : vector<4x8x8xf32> to vector<4x8xf32>
    %9 = vector.shape_cast %8 : vector<4x8xf32> to vector<4x8x1xf32>
    %10 = vector.broadcast %9 : vector<4x8x1xf32> to vector<4x8x128xf32>
    %11 = arith.maximumf %7, %10 : vector<4x8x128xf32>
    %12 = arith.subf %7, %11 : vector<4x8x128xf32>
    %13 = math.exp2 %12 : vector<4x8x128xf32>
    %14 = vector.extract_strided_slice %11 {offsets = [0, 0, 0], sizes = [4, 8, 1], strides = [1, 1, 1]} : vector<4x8x128xf32> to vector<4x8x1xf32>
    %15 = vector.broadcast %14 : vector<4x8x1xf32> to vector<4x8x8xf32>
    %16 = arith.subf %6, %15 : vector<4x8x8xf32>
    %17 = math.exp2 %16 : vector<4x8x8xf32>
    %c0_13 = arith.constant 0 : index
    %c0_14 = arith.constant 0 : index
    %c0_15 = arith.constant 0 : index
    %18 = vector.load %arg8[%c0_13, %c0_14, %c0_15] : memref<4x8x128xf32, #tpu.memory_space<vmem>>, vector<4x8x128xf32>
    %19 = arith.mulf %13, %18 : vector<4x8x128xf32>
    %cst_16 = arith.constant dense<0.000000e+00> : vector<4x8xf32>
    %20 = vector.multi_reduction <add>, %17, %cst_16 [2] : vector<4x8x8xf32> to vector<4x8xf32>
    %21 = vector.shape_cast %20 : vector<4x8xf32> to vector<4x8x1xf32>
    %22 = vector.broadcast %21 : vector<4x8x1xf32> to vector<4x8x128xf32>
    %23 = arith.addf %19, %22 : vector<4x8x128xf32>
    %c0_17 = arith.constant 0 : index
    %c0_18 = arith.constant 0 : index
    %c0_19 = arith.constant 0 : index
    %24 = vector.load %arg8[%c0_17, %c0_18, %c0_19] : memref<4x8x128xf32, #tpu.memory_space<vmem>>, vector<4x8x128xf32>
    tpu.vector_store %arg8[%c0_17, %c0_18, %c0_19], %23 {strides = array<i32>} : memref<4x8x128xf32, #tpu.memory_space<vmem>>, vector<4x8x128xf32>,
    %cst_20 = arith.constant dense<0.000000e+00> : vector<4x8x32xf32>
    %25 = tpu.matmul %17, %5, %cst_20 {dimension_numbers = #tpu.dot_dimension_numbers<[2], [1], [1], [2], [0, 0, 0, 1, 1, 2], [0], [0]>} : vector<4x8x8xf32>, vector<4x8x32xf32>, vector<4x8x32xf32> -> vector<4x8x32xf32>
    %26 = vector.extract_strided_slice %13 {offsets = [0, 0, 0], sizes = [4, 8, 32], strides = [1, 1, 1]} : vector<4x8x128xf32> to vector<4x8x32xf32>
    %c0_21 = arith.constant 0 : index
    %c0_22 = arith.constant 0 : index
    %c0_23 = arith.constant 0 : index
    %27 = vector.load %arg9[%c0_21, %c0_22, %c0_23] : memref<4x8x32xf32, #tpu.memory_space<vmem>>, vector<4x8x32xf32>
    %28 = arith.mulf %26, %27 : vector<4x8x32xf32>
    %29 = arith.addf %28, %25 : vector<4x8x32xf32>
    %c0_24 = arith.constant 0 : index
    %c0_25 = arith.constant 0 : index
    %c0_26 = arith.constant 0 : index
    %30 = vector.load %arg9[%c0_24, %c0_25, %c0_26] : memref<4x8x32xf32, #tpu.memory_space<vmem>>, vector<4x8x32xf32>
    tpu.vector_store %arg9[%c0_24, %c0_25, %c0_26], %29 {strides = array<i32>} : memref<4x8x32xf32, #tpu.memory_space<vmem>>, vector<4x8x32xf32>,
    %c0_27 = arith.constant 0 : index
    %c0_28 = arith.constant 0 : index
    %c0_29 = arith.constant 0 : index
    %31 = vector.load %arg7[%c0_27, %c0_28, %c0_29] : memref<4x8x128xf32, #tpu.memory_space<vmem>>, vector<4x8x128xf32>
    tpu.vector_store %arg7[%c0_27, %c0_28, %c0_29], %11 {strides = array<i32>} : memref<4x8x128xf32, #tpu.memory_space<vmem>>, vector<4x8x128xf32>,
    %c0_i32_30 = arith.constant 0 : i32
    %32 = arith.cmpi eq, %arg2, %c0_i32_30 : i32
    %33 = arith.extui %32 : i1 to i32
    %c0_i32_31 = arith.constant 0 : i32
    %34 = arith.cmpi ne, %33, %c0_i32_31 : i32
    scf.if %34 {
      %c0_32 = arith.constant 0 : index
      %c0_33 = arith.constant 0 : index
      %c0_34 = arith.constant 0 : index
      %35 = vector.load %arg8[%c0_32, %c0_33, %c0_34] : memref<4x8x128xf32, #tpu.memory_space<vmem>>, vector<4x8x128xf32>
      %36 = tpu.reciprocal %35 {approx = true} : vector<4x8x128xf32> -> vector<4x8x128xf32>
      %37 = arith.mulf %35, %36 : vector<4x8x128xf32>
      %cst_35 = arith.constant 2.000000e+00 : f32
      %38 = vector.broadcast %cst_35 : f32 to vector<4x8x128xf32>
      %39 = arith.subf %38, %37 : vector<4x8x128xf32>
      %40 = arith.mulf %36, %39 : vector<4x8x128xf32>
      %41 = vector.extract_strided_slice %40 {offsets = [0, 0, 0], sizes = [4, 8, 32], strides = [1, 1, 1]} : vector<4x8x128xf32> to vector<4x8x32xf32>
      %c0_36 = arith.constant 0 : index
      %c0_37 = arith.constant 0 : index
      %c0_38 = arith.constant 0 : index
      %42 = vector.load %arg9[%c0_36, %c0_37, %c0_38] : memref<4x8x32xf32, #tpu.memory_space<vmem>>, vector<4x8x32xf32>
      %43 = arith.mulf %42, %41 : vector<4x8x32xf32>
      %c0_39 = arith.constant 0 : index
      %c0_40 = arith.constant 0 : index
      %c0_41 = arith.constant 0 : index
      %44 = vector.load %arg6[%c0_39, %c0_40, %c0_41] : memref<4x8x32xf32, #tpu.memory_space<vmem>>, vector<4x8x32xf32>
      tpu.vector_store %arg6[%c0_39, %c0_40, %c0_41], %43 {strides = array<i32>} : memref<4x8x32xf32, #tpu.memory_space<vmem>>, vector<4x8x32xf32>,
    } else {
    }
    return
  }
  func.func @transform_0(%arg0: i32, %arg1: i32, %arg2: i32) -> (i32, i32, i32) {
    %c0_i32 = arith.constant 0 : i32
    %c0_i32_0 = arith.constant 0 : i32
    return %arg0, %arg1, %c0_i32 : i32, i32, i32
  }
  func.func @transform_1(%arg0: i32, %arg1: i32, %arg2: i32) -> (i32, i32, i32) {
    %c0_i32 = arith.constant 0 : i32
    %c0_i32_0 = arith.constant 0 : i32
    return %arg0, %arg2, %c0_i32 : i32, i32, i32
  }
  func.func @transform_2(%arg0: i32, %arg1: i32, %arg2: i32) -> (i32, i32, i32) {
    %c0_i32 = arith.constant 0 : i32
    %c0_i32_0 = arith.constant 0 : i32
    return %arg0, %arg2, %c0_i32 : i32, i32, i32
  }
  func.func @transform_3(%arg0: i32, %arg1: i32, %arg2: i32) -> (i32, i32, i32) {
    %c0_i32 = arith.constant 0 : i32
    %c0_i32_0 = arith.constant 0 : i32
    return %arg0, %arg1, %c0_i32 : i32, i32, i32
  }
}

</mosaic_0001>

<llo_original>
// kernel: tpu_custom_call.1
$region0: #{tpu_custom_call.1}
  #allocation0 [shape = 'u32[]', space=smem, size = 0x4, offset = 0x4, fixed_abs, tag = 'smem constant byte address 0x4 - core index']
  #allocation1 [shape = 'u32[144,128]{1,0:T(1,128)}', space=vmem, size = 0x12000, scoped, tag = 'internal scratch']
  #allocation2 [shape = 'f32[4,8,128]{2,1,0:T(8,128)}', space=vmem, size = 0x4000, scoped, tag = 'scratch operand']
  #allocation3 [shape = 'f32[4,8,128]{2,1,0:T(8,128)}', space=vmem, size = 0x4000, scoped, tag = 'scratch operand']
  #allocation4 [shape = 'f32[4,8,32]{2,1,0:T(8,128)}', space=vmem, size = 0x4000, scoped, tag = 'scratch operand']
  #allocation5 [shape = 'f32[4,8,32]{2,1,0:T(8,128)}', space=vmem, size = 0x4000, scoped, tag = 'scratch operand']
  %s0 = inlined_call_operand.hbm [shape: f32[8,8,32], index: 0, kind: input, shape index: {}]
  %s1 = inlined_call_operand.hbm [shape: f32[8,8,32], index: 1, kind: input, shape index: {}]
  %s2 = inlined_call_operand.hbm [shape: f32[8,8,32], index: 2, kind: input, shape index: {}]
  %s3 = inlined_call_operand.hbm [shape: f32[8,8,32], index: 3, kind: output, shape index: {}]
  %s4 = sld [smem:[#allocation0]]
  $region65: #{tpu_custom_call.1} parent=0
    _
  %s6 = ssub.s32 1, %s4
  %s7 = scalar_select 0, %s6, %s4
  $region1: #{tpu_custom_call.1} parent=0
    #allocation6 [shape = 'u8[32768]{0}', space=vmem, size = 0x8000, scoped, tag = 'input window, operand 0']
    #allocation7 [shape = 's32[2]{0}', space=sflag, size = 0x8, scoped, tag = 'scoped memory for tpu_custom_call.1']
    #allocation8 [shape = 's32[2]{0}', space=sflag, size = 0x8, scoped, tag = 'scoped memory for tpu_custom_call.1']
    #allocation9 [shape = 'u8[32768]{0}', space=vmem, size = 0x8000, scoped, tag = 'input window, operand 1']
    #allocation10 [shape = 's32[2]{0}', space=sflag, size = 0x8, scoped, tag = 'scoped memory for tpu_custom_call.1']
    #allocation11 [shape = 'u8[32768]{0}', space=vmem, size = 0x8000, scoped, tag = 'input window, operand 2']
    #allocation12 [shape = 'u8[32768]{0}', space=vmem, size = 0x8000, scoped, tag = 'output window, operand 0']
    %8 = vsyncpa [#allocation7], 0
    %s9 = scalar_lea.sflag [#allocation7], 1
    %10 = vsyncpa %s9, 0
    %11 = vsyncpa [#allocation10], 0
    %s12 = scalar_lea.sflag [#allocation10], 1
    %13 = vsyncpa %s12, 0
    %14 = vsyncpa [#allocation8], 0
    %s15 = scalar_lea.sflag [#allocation8], 1
    %16 = vsyncpa %s15, 0
    loop: start=0, step=1, limit=4
    $region2: #{tpu_custom_call.1} parent=1 // loop_pre_header
      _
    $region3: #{tpu_custom_call.1} parent=1 // loop_header
      %s18 = sphi 0, %s22
      %p19 = scmp.ge.s32.totalorder %s18, 4
      %s25 = sphi 0, %s44
      %s26 = sphi 0, %s40
      %s27 = sphi 0, %s36
      %s28 = sphi 0, %s25
      %s29 = sphi 0, %s26
      %s30 = sphi 0, %s27
      %s31 = sphi 0, %s28
      %s32 = sphi 0, %s29
      %s33 = sphi 0, %s30
      %s49 = sphi 0, %s51
      %s52 = sphi 0, %s49
      %s53 = sphi 0, %s52
      %s69 = sphi 0, %s53
      %s77 = sphi 0, %s79
      %s80 = sphi 0, %s77
      %s81 = sphi 0, %s80
      %s97 = sphi 0, %s81
      %s105 = sphi 0, %s107
      %s108 = sphi 0, %s105
      %s109 = sphi 0, %s108
      %s125 = sphi 0, %s109
      %s133 = sphi 0, %s135
      %s136 = sphi 0, %s133
      %s137 = sphi 0, %s136
      %s153 = sphi 0, %s137
    $region4: #{tpu_custom_call.1} parent=1 // loop_header_branch
      %21 = sbr.rel (%p19) target = $region8
    $region5: #{tpu_custom_call.1} parent=1 // loop_body
      %s23 = ssub.s32 %s18, 1
      %s24 = ssub.s32 %s18, 2
      %s34 = sadd.s32 1, %s27
      %p35 = scmp.ge.s32.totalorder %s34, 1
      %s36 = scalar_select %p35, 0, %s34
      %s37 = sadd.s32 1, %s26
      %s38 = scalar_select %p35, %s37, %s26
      %p39 = scmp.ge.s32.totalorder %s38, 1
      %s40 = scalar_select %p39, 0, %s38
      %s41 = sadd.s32 1, %s25
      %s42 = scalar_select %p39, %s41, %s25
      %p43 = scmp.ge.s32.totalorder %s42, 2
      %s44 = scalar_select %p43, 0, %s42
      %s45 = ssub.s32 %s25, %s44
      %s46 = ssub.s32 %s26, %s40
      %s47 = sor.u32 %s45, %s46
      %p48 = scmp.eq.s32.totalorder %s47, 0
      %s50 = sadd.s32 %s49, 1
      %s51 = scalar_select %p48, %s49, %s50
      %p54 = pneg %p48
      %p55 = scmp.eq.s32.totalorder %s18, 1
      %p56 = por %p54, %p55
      %p57 = scmp.ne.s32.totalorder %s49, %s52
      %p58 = scmp.eq.s32.totalorder %s18, 0
      %p59 = por %p57, %p58
      %p60 = scmp.ne.s32.totalorder %s49, %s52
      %p61 = scmp.eq.s32.totalorder %s23, 1
      %p62 = por %p60, %p61
      %p63 = scmp.ne.s32.totalorder %s52, %s53
      %p64 = scmp.eq.s32.totalorder %s23, 0
      %p65 = por %p63, %p64
      %p66 = scmp.ne.s32.totalorder %s52, %s53
      %p67 = scmp.eq.s32.totalorder %s24, 1
      %p68 = por %p66, %p67
      %p70 = scmp.ne.s32.totalorder %s53, %s69
      %p71 = scmp.eq.s32.totalorder %s24, 0
      %p72 = por %p70, %p71
      %s73 = ssub.s32 %s25, %s44
      %s74 = ssub.s32 %s27, %s36
      %s75 = sor.u32 %s73, %s74
      %p76 = scmp.eq.s32.totalorder %s75, 0
      %s78 = sadd.s32 %s77, 1
      %s79 = scalar_select %p76, %s77, %s78
      %p82 = pneg %p76
      %p83 = scmp.eq.s32.totalorder %s18, 1
      %p84 = por %p82, %p83
      %p85 = scmp.ne.s32.totalorder %s77, %s80
      %p86 = scmp.eq.s32.totalorder %s18, 0
      %p87 = por %p85, %p86
      %p88 = scmp.ne.s32.totalorder %s77, %s80
      %p89 = scmp.eq.s32.totalorder %s23, 1
      %p90 = por %p88, %p89
      %p91 = scmp.ne.s32.totalorder %s80, %s81
      %p92 = scmp.eq.s32.totalorder %s23, 0
      %p93 = por %p91, %p92
      %p94 = scmp.ne.s32.totalorder %s80, %s81
      %p95 = scmp.eq.s32.totalorder %s24, 1
      %p96 = por %p94, %p95
      %p98 = scmp.ne.s32.totalorder %s81, %s97
      %p99 = scmp.eq.s32.totalorder %s24, 0
      %p100 = por %p98, %p99
      %s101 = ssub.s32 %s25, %s44
      %s102 = ssub.s32 %s27, %s36
      %s103 = sor.u32 %s101, %s102
      %p104 = scmp.eq.s32.totalorder %s103, 0
      %s106 = sadd.s32 %s105, 1
      %s107 = scalar_select %p104, %s105, %s106
      %p110 = pneg %p104
      %p111 = scmp.eq.s32.totalorder %s18, 1
      %p112 = por %p110, %p111
      %p113 = scmp.ne.s32.totalorder %s105, %s108
      %p114 = scmp.eq.s32.totalorder %s18, 0
      %p115 = por %p113, %p114
      %p116 = scmp.ne.s32.totalorder %s105, %s108
      %p117 = scmp.eq.s32.totalorder %s23, 1
      %p118 = por %p116, %p117
      %p119 = scmp.ne.s32.totalorder %s108, %s109
      %p120 = scmp.eq.s32.totalorder %s23, 0
      %p121 = por %p119, %p120
      %p122 = scmp.ne.s32.totalorder %s108, %s109
      %p123 = scmp.eq.s32.totalorder %s24, 1
      %p124 = por %p122, %p123
      %p126 = scmp.ne.s32.totalorder %s109, %s125
      %p127 = scmp.eq.s32.totalorder %s24, 0
      %p128 = por %p126, %p127
      %s129 = ssub.s32 %s25, %s44
      %s130 = ssub.s32 %s26, %s40
      %s131 = sor.u32 %s129, %s130
      %p132 = scmp.eq.s32.totalorder %s131, 0
      %s134 = sadd.s32 %s133, 1
      %s135 = scalar_select %p132, %s133, %s134
      %p138 = pneg %p132
      %p139 = scmp.eq.s32.totalorder %s18, 1
      %p140 = por %p138, %p139
      %p141 = scmp.ne.s32.totalorder %s133, %s136
      %p142 = scmp.eq.s32.totalorder %s18, 0
      %p143 = por %p141, %p142
      %p144 = scmp.ne.s32.totalorder %s133, %s136
      %p145 = scmp.eq.s32.totalorder %s23, 1
      %p146 = por %p144, %p145
      %p147 = scmp.ne.s32.totalorder %s136, %s137
      %p148 = scmp.eq.s32.totalorder %s23, 0
      %p149 = por %p147, %p148
      %p150 = scmp.ne.s32.totalorder %s136, %s137
      %p151 = scmp.eq.s32.totalorder %s24, 1
      %p152 = por %p150, %p151
      %p154 = scmp.ne.s32.totalorder %s137, %s153
      %p155 = scmp.eq.s32.totalorder %s24, 0
      %p156 = por %p154, %p155
      %p157 = scmp.le.s32.totalorder 1, %s18
      %p158 = scmp.lt.s32.totalorder %s18, 3
      %p159 = pnand %p157, %p158
      %p160 = pneg %p159
      // Predicated region
      $region9: #{tpu_custom_call.1} parent=5 // pred_check
        _
      $region10: #{tpu_custom_call.1} parent=5 // pred_check_branch
        %162 = sbr.rel (%p159) target = $region12
      $region11: #{tpu_custom_call.1} parent=5 // pred_region
        %s163 = ssub.s32 %s18, 1
      $region12: #{tpu_custom_call.1} parent=5 // pred_fallthru
        _
      %p164 = scmp.lt.s32.totalorder %s18, 2
      // Predicated region
      $region13: #{tpu_custom_call.1} parent=5 // pred_check
        %p165 = pneg %p164
      $region14: #{tpu_custom_call.1} parent=5 // pred_check_branch
        %167 = sbr.rel (%p165) target = $region16
      $region15: #{tpu_custom_call.1} parent=5 // pred_region
        // Predicated region
        $region17: #{tpu_custom_call.1} parent=15 // pred_check
          %p168 = pneg %p59
        $region18: #{tpu_custom_call.1} parent=15 // pred_check_branch
          %170 = sbr.rel (%p168) target = $region20
        $region19: #{tpu_custom_call.1} parent=15 // pred_region
          %s171 = sand.u32 %s49, 1
          %s172 = scalar_lea.sflag [#allocation7], %s171
          %s173 = sand.u32 %s49, 1
          %s174 = smul.addr %s173, 32
          %s175 = scalar_lea.vmem [#allocation6], %s174
          %s176 = smul.u32 4, %s25
          %s178 = ssub.s32 512, 512
          %179 = vsyncadd %s172, %s178
          %s180 = sadd.s32 %s26, %s176
          %s181 = smul.addr %s180, 128
          %s182 = scalar_lea.hbm %s0, %s181
          %s183 = sshll.u32 %s175, 4
          %s184 = int_to_ptr.vmem [resolvable:$true] %s183
          %189 = dma.hbm_to_vmem [thread:$0]  %s182, 512, %s184, %s172, 128, 128, 8
        $region20: #{tpu_custom_call.1} parent=15 // pred_fallthru
          _
        // Predicated region
        $region21: #{tpu_custom_call.1} parent=15 // pred_check
          %p190 = pneg %p87
        $region22: #{tpu_custom_call.1} parent=15 // pred_check_branch
          %192 = sbr.rel (%p190) target = $region24
        $region23: #{tpu_custom_call.1} parent=15 // pred_region
          %s193 = sand.u32 %s18, 1
          %s194 = scalar_lea.sflag [#allocation10], %s193
          %s195 = sand.u32 %s77, 1
          %s196 = smul.addr %s195, 32
          %s197 = scalar_lea.vmem [#allocation9], %s196
          %s198 = smul.u32 4, %s25
          %s200 = ssub.s32 512, 512
          %201 = vsyncadd %s194, %s200
          %s202 = sadd.s32 %s27, %s198
          %s203 = smul.addr %s202, 128
          %s204 = scalar_lea.hbm %s1, %s203
          %s205 = sshll.u32 %s197, 4
          %s206 = int_to_ptr.vmem [resolvable:$true] %s205
          %211 = dma.hbm_to_vmem [thread:$0]  %s204, 512, %s206, %s194, 128, 128, 8
        $region24: #{tpu_custom_call.1} parent=15 // pred_fallthru
          _
        // Predicated region
        $region25: #{tpu_custom_call.1} parent=15 // pred_check
          %p212 = pneg %p115
        $region26: #{tpu_custom_call.1} parent=15 // pred_check_branch
          %214 = sbr.rel (%p212) target = $region28
        $region27: #{tpu_custom_call.1} parent=15 // pred_region
          %s215 = sand.u32 %s18, 1
          %s216 = scalar_lea.sflag [#allocation10], %s215
          %s217 = sand.u32 %s105, 1
          %s218 = smul.addr %s217, 32
          %s219 = scalar_lea.vmem [#allocation11], %s218
          %s220 = smul.u32 4, %s25
          %s222 = ssub.s32 512, 512
          %223 = vsyncadd %s216, %s222
          %s224 = sadd.s32 %s27, %s220
          %s225 = smul.addr %s224, 128
          %s226 = scalar_lea.hbm %s2, %s225
          %s227 = sshll.u32 %s219, 4
          %s228 = int_to_ptr.vmem [resolvable:$true] %s227
          %233 = dma.hbm_to_vmem [thread:$0]  %s226, 512, %s228, %s216, 128, 128, 8
        $region28: #{tpu_custom_call.1} parent=15 // pred_fallthru
          _
      $region16: #{tpu_custom_call.1} parent=5 // pred_fallthru
        _
      %p234 = scmp.le.s32.totalorder 1, %s18
      %p235 = scmp.lt.s32.totalorder %s18, 3
      %p236 = pnand %p234, %p235
      %p237 = pneg %p236
      // Predicated region
      $region29: #{tpu_custom_call.1} parent=5 // pred_check
        _
      $region30: #{tpu_custom_call.1} parent=5 // pred_check_branch
        %239 = sbr.rel (%p236) target = $region32
      $region31: #{tpu_custom_call.1} parent=5 // pred_region
        %s240 = ssub.s32 %s18, 1
        %s241 = sand.u32 %s52, 1
        %s242 = scalar_lea.sflag [#allocation7], %s241
        %s243 = sand.u32 %s52, 1
        %s244 = smul.addr %s243, 32
        %s245 = scalar_lea.vmem [#allocation6], %s244
        // Predicated region
        $region33: #{tpu_custom_call.1} parent=31 // pred_check
          %p246 = pneg %p65
        $region34: #{tpu_custom_call.1} parent=31 // pred_check_branch
          %248 = sbr.rel (%p246) target = $region36
        $region35: #{tpu_custom_call.1} parent=31 // pred_region
          %249 = dma.done %s242, 512
        $region36: #{tpu_custom_call.1} parent=31 // pred_fallthru
          _
        %s250 = sand.u32 %s23, 1
        %s251 = scalar_lea.sflag [#allocation10], %s250
        %s252 = sand.u32 %s80, 1
        %s253 = smul.addr %s252, 32
        %s254 = scalar_lea.vmem [#allocation9], %s253
        // Predicated region
        $region37: #{tpu_custom_call.1} parent=31 // pred_check
          %p255 = pneg %p93
        $region38: #{tpu_custom_call.1} parent=31 // pred_check_branch
          %257 = sbr.rel (%p255) target = $region40
        $region39: #{tpu_custom_call.1} parent=31 // pred_region
          %258 = dma.done %s251, 512
        $region40: #{tpu_custom_call.1} parent=31 // pred_fallthru
          _
        %s259 = sand.u32 %s23, 1
        %s260 = scalar_lea.sflag [#allocation10], %s259
        %s261 = sand.u32 %s108, 1
        %s262 = smul.addr %s261, 32
        %s263 = scalar_lea.vmem [#allocation11], %s262
        // Predicated region
        $region41: #{tpu_custom_call.1} parent=31 // pred_check
          %p264 = pneg %p121
        $region42: #{tpu_custom_call.1} parent=31 // pred_check_branch
          %266 = sbr.rel (%p264) target = $region44
        $region43: #{tpu_custom_call.1} parent=31 // pred_region
          %267 = dma.done %s260, 512
        $region44: #{tpu_custom_call.1} parent=31 // pred_fallthru
          _
        %s268 = sand.u32 %s52, 1
        %s269 = scalar_lea.sflag [#allocation7], %s268
        %s270 = sand.u32 %s52, 1
        %s271 = smul.addr %s270, 32
        %s272 = scalar_lea.vmem [#allocation6], %s271
        %p273 = pneg %p65
        %p274 = pneg %p62
        %s275 = sand.u32 %s23, 1
        %s276 = scalar_lea.sflag [#allocation10], %s275
        %s277 = sand.u32 %s80, 1
        %s278 = smul.addr %s277, 32
        %s279 = scalar_lea.vmem [#allocation9], %s278
        %p280 = pneg %p93
        %p281 = pneg %p90
        %s282 = sand.u32 %s23, 1
        %s283 = scalar_lea.sflag [#allocation10], %s282
        %s284 = sand.u32 %s108, 1
        %s285 = smul.addr %s284, 32
        %s286 = scalar_lea.vmem [#allocation11], %s285
        %p287 = pneg %p121
        %p288 = pneg %p118
        %p289 = pneg %p149
        %p290 = pneg %p146
        %s291 = sand.u32 %s136, 1
        %s292 = scalar_lea.sflag [#allocation8], %s291
        %s293 = sand.u32 %s136, 1
        %s294 = smul.addr %s293, 32
        %s295 = scalar_lea.vmem [#allocation12], %s294
        %s296 = smul.u32 4, %s28
        %s297 = smul.u32 4, %s28
        %s298 = smul.u32 4, %s28
        %s299 = smul.u32 4, %s28
        %p300 = scmp.eq.s32.totalorder %s30, 0
        // Predicated region
        $region45: #{tpu_custom_call.1} parent=31 // pred_check
          %p301 = pneg %p300
        $region46: #{tpu_custom_call.1} parent=31 // pred_check_branch
          %303 = sbr.rel (%p301) target = $region48
        $region47: #{tpu_custom_call.1} parent=31 // pred_region
          %304 = vst [vmem:[#allocation2] sm:$0xff] -1e+30
          %305 = vst [vmem:[#allocation2 + $0x8] sm:$0xff] -1e+30
          %306 = vst [vmem:[#allocation2 + $0x10] sm:$0xff] -1e+30
          %307 = vst [vmem:[#allocation2 + $0x18] sm:$0xff] -1e+30
          %308 = vst [vmem:[#allocation3] sm:$0xff] 0.0
          %309 = vst [vmem:[#allocation3 + $0x8] sm:$0xff] 0.0
          %310 = vst [vmem:[#allocation3 + $0x10] sm:$0xff] 0.0
          %311 = vst [vmem:[#allocation3 + $0x18] sm:$0xff] 0.0
          %vm312 = vcmask 261120
          %313 = vst.msk [vmem:[#allocation4] sm:$0xff] %vm312, 0.0
          %314 = vst.msk [vmem:[#allocation4 + $0x8] sm:$0xff] %vm312, 0.0
          %315 = vst.msk [vmem:[#allocation4 + $0x10] sm:$0xff] %vm312, 0.0
          %316 = vst.msk [vmem:[#allocation4 + $0x18] sm:$0xff] %vm312, 0.0
          %v317 = vld [vmem:[%s245] sm:$0xff]
          %v318 = vld [vmem:[%s245 + $0x8] sm:$0xff]
          %v319 = vld [vmem:[%s245 + $0x10] sm:$0xff]
          %v320 = vld [vmem:[%s245 + $0x18] sm:$0xff]
          %v321 = vmul.f32 %v317, 0.25503486
          %v322 = vmul.f32 %v318, 0.25503486
          %v323 = vmul.f32 %v319, 0.25503486
          %v324 = vmul.f32 %v320, 0.25503486
          %325 = vst.msk [vmem:[#allocation5] sm:$0xff] %vm312, %v321
          %326 = vst.msk [vmem:[#allocation5 + $0x8] sm:$0xff] %vm312, %v322
          %327 = vst.msk [vmem:[#allocation5 + $0x10] sm:$0xff] %vm312, %v323
          %328 = vst.msk [vmem:[#allocation5 + $0x18] sm:$0xff] %vm312, %v324
        $region48: #{tpu_custom_call.1} parent=31 // pred_fallthru
          _
        %v329 = vld [vmem:[#allocation5] sm:$0xff]
        %v330 = vld [vmem:[#allocation5 + $0x8] sm:$0xff]
        %v331 = vld [vmem:[#allocation5 + $0x10] sm:$0xff]
        %v332 = vld [vmem:[#allocation5 + $0x18] sm:$0xff]
        %v333 = vld [vmem:[%s254] sm:$0xff]
        %v334 = vld [vmem:[%s254 + $0x8] sm:$0xff]
        %v335 = vld [vmem:[%s254 + $0x10] sm:$0xff]
        %v336 = vld [vmem:[%s254 + $0x18] sm:$0xff]
        %v337 = vld [vmem:[%s263] sm:$0xff]
        %v338 = vld [vmem:[%s263 + $0x8] sm:$0xff]
        %v339 = vld [vmem:[%s263 + $0x10] sm:$0xff]
        %v340 = vld [vmem:[%s263 + $0x18] sm:$0xff]
        %vm341 = vcmask 261120
        %v343 = vsel %vm341, %v329, 0
        %v346 = vsel %vm341, %v333, 0
        %348 = vmatprep.subr.mxu0 0.0
        %349 = vmatpush1.xpose.msra.mxu0 0.0
        %350 = vmatprep.subr.mxu0 0.0
        %351 = vmatpush1.xpose.msra.mxu0 0.0
        %352 = vmatprep.subr.mxu0 0.0
        %353 = vmatpush1.xpose.msra.mxu0 0.0
        %354 = vmatprep.subr.mxu0 0.0
        %355 = vmatpush1.xpose.msra.mxu0 0.0
        %356 = vmatprep.subr.mxu0 0.0
        %357 = vmatpush1.xpose.msra.mxu0 0.0
        %358 = vmatprep.subr.mxu0 0.0
        %359 = vmatpush1.xpose.msra.mxu0 0.0
        %360 = vmatprep.subr.mxu0 0.0
        %361 = vmatpush1.xpose.msra.mxu0 0.0
        %362 = vmatprep.subr.mxu0 0.0
        %363 = vmatpush1.xpose.msra.mxu0 0.0
        %364 = vmatprep.subr.mxu0 0.0
        %365 = vmatpush1.xpose.msra.mxu0 0.0
        %366 = vmatprep.subr.mxu0 0.0
        %367 = vmatpush1.xpose.msra.mxu0 0.0
        %368 = vmatprep.subr.mxu0 0.0
        %369 = vmatpush1.xpose.msra.mxu0 0.0
        %370 = vmatprep.subr.mxu0 0.0
        %371 = vmatpush1.xpose.msra.mxu0 0.0
        %372 = vmatprep.subr.mxu0 0.0
        %373 = vmatpush1.xpose.msra.mxu0 0.0
        %374 = vmatprep.subr.mxu0 0.0
        %375 = vmatpush1.xpose.msra.mxu0 0.0
        %376 = vmatprep.subr.mxu0 0.0
        %377 = vmatpush1.xpose.msra.mxu0 0.0
        %378 = vmatprep.subr.mxu0 0.0
        %379 = vmatpush1.xpose.msra.mxu0 %v346
        %380 = vmatprep.subr.mxu0 0.0
        %381 = vmatpush2.xpose.msra.mxu0 0.0
        %382 = vmatprep.subr.mxu0 0.0
        %383 = vmatpush2.xpose.msra.mxu0 0.0
        %384 = vmatprep.subr.mxu0 0.0
        %385 = vmatpush2.xpose.msra.mxu0 0.0
        %386 = vmatprep.subr.mxu0 0.0
        %387 = vmatpush2.xpose.msra.mxu0 0.0
        %388 = vmatprep.subr.mxu0 0.0
        %389 = vmatpush2.xpose.msra.mxu0 0.0
        %390 = vmatprep.subr.mxu0 0.0
        %391 = vmatpush2.xpose.msra.mxu0 0.0
        %392 = vmatprep.subr.mxu0 0.0
        %393 = vmatpush2.xpose.msra.mxu0 0.0
        %394 = vmatprep.subr.mxu0 0.0
        %395 = vmatpush2.xpose.msra.mxu0 0.0
        %396 = vmatprep.subr.mxu0 0.0
        %397 = vmatpush2.xpose.msra.mxu0 0.0
        %398 = vmatprep.subr.mxu0 0.0
        %399 = vmatpush2.xpose.msra.mxu0 0.0
        %400 = vmatprep.subr.mxu0 0.0
        %401 = vmatpush2.xpose.msra.mxu0 0.0
        %402 = vmatprep.subr.mxu0 0.0
        %403 = vmatpush2.xpose.msra.mxu0 0.0
        %404 = vmatprep.subr.mxu0 0.0
        %405 = vmatpush2.xpose.msra.mxu0 0.0
        %406 = vmatprep.subr.mxu0 0.0
        %407 = vmatpush2.xpose.msra.mxu0 0.0
        %408 = vmatprep.subr.mxu0 0.0
        %409 = vmatpush2.xpose.msra.mxu0 0.0
        %410 = vmatprep.subr.mxu0 0.0
        %411 = vmatpush2.xpose.msra.mxu0 0.0
        %412 = vmatprep.mubr.f32.mxu0 0.0
        %413 = vmatmul.mubr.f32.gmra.mxu0 %v343
        %v414 = vpop.f32.mrf.mxu0
        %v415 = vadd.f32 0.0, %v414
        %v416 = vpop.f32.mrf.mxu0
        %417 = vdwg.mxu0
        %v419 = vsel %vm341, %v330, 0
        %v422 = vsel %vm341, %v334, 0
        %424 = vmatprep.subr.mxu0 0.0
        %425 = vmatpush1.xpose.msra.mxu0 0.0
        %426 = vmatprep.subr.mxu0 0.0
        %427 = vmatpush1.xpose.msra.mxu0 0.0
        %428 = vmatprep.subr.mxu0 0.0
        %429 = vmatpush1.xpose.msra.mxu0 0.0
        %430 = vmatprep.subr.mxu0 0.0
        %431 = vmatpush1.xpose.msra.mxu0 0.0
        %432 = vmatprep.subr.mxu0 0.0
        %433 = vmatpush1.xpose.msra.mxu0 0.0
        %434 = vmatprep.subr.mxu0 0.0
        %435 = vmatpush1.xpose.msra.mxu0 0.0
        %436 = vmatprep.subr.mxu0 0.0
        %437 = vmatpush1.xpose.msra.mxu0 0.0
        %438 = vmatprep.subr.mxu0 0.0
        %439 = vmatpush1.xpose.msra.mxu0 0.0
        %440 = vmatprep.subr.mxu0 0.0
        %441 = vmatpush1.xpose.msra.mxu0 0.0
        %442 = vmatprep.subr.mxu0 0.0
        %443 = vmatpush1.xpose.msra.mxu0 0.0
        %444 = vmatprep.subr.mxu0 0.0
        %445 = vmatpush1.xpose.msra.mxu0 0.0
        %446 = vmatprep.subr.mxu0 0.0
        %447 = vmatpush1.xpose.msra.mxu0 0.0
        %448 = vmatprep.subr.mxu0 0.0
        %449 = vmatpush1.xpose.msra.mxu0 0.0
        %450 = vmatprep.subr.mxu0 0.0
        %451 = vmatpush1.xpose.msra.mxu0 0.0
        %452 = vmatprep.subr.mxu0 0.0
        %453 = vmatpush1.xpose.msra.mxu0 0.0
        %454 = vmatprep.subr.mxu0 0.0
        %455 = vmatpush1.xpose.msra.mxu0 %v422
        %456 = vmatprep.subr.mxu0 0.0
        %457 = vmatpush2.xpose.msra.mxu0 0.0
        %458 = vmatprep.subr.mxu0 0.0
        %459 = vmatpush2.xpose.msra.mxu0 0.0
        %460 = vmatprep.subr.mxu0 0.0
        %461 = vmatpush2.xpose.msra.mxu0 0.0
        %462 = vmatprep.subr.mxu0 0.0
        %463 = vmatpush2.xpose.msra.mxu0 0.0
        %464 = vmatprep.subr.mxu0 0.0
        %465 = vmatpush2.xpose.msra.mxu0 0.0
        %466 = vmatprep.subr.mxu0 0.0
        %467 = vmatpush2.xpose.msra.mxu0 0.0
        %468 = vmatprep.subr.mxu0 0.0
        %469 = vmatpush2.xpose.msra.mxu0 0.0
        %470 = vmatprep.subr.mxu0 0.0
        %471 = vmatpush2.xpose.msra.mxu0 0.0
        %472 = vmatprep.subr.mxu0 0.0
        %473 = vmatpush2.xpose.msra.mxu0 0.0
        %474 = vmatprep.subr.mxu0 0.0
        %475 = vmatpush2.xpose.msra.mxu0 0.0
        %476 = vmatprep.subr.mxu0 0.0
        %477 = vmatpush2.xpose.msra.mxu0 0.0
        %478 = vmatprep.subr.mxu0 0.0
        %479 = vmatpush2.xpose.msra.mxu0 0.0
        %480 = vmatprep.subr.mxu0 0.0
        %481 = vmatpush2.xpose.msra.mxu0 0.0
        %482 = vmatprep.subr.mxu0 0.0
        %483 = vmatpush2.xpose.msra.mxu0 0.0
        %484 = vmatprep.subr.mxu0 0.0
        %485 = vmatpush2.xpose.msra.mxu0 0.0
        %486 = vmatprep.subr.mxu0 0.0
        %487 = vmatpush2.xpose.msra.mxu0 0.0
        %488 = vmatprep.mubr.f32.mxu0 0.0
        %489 = vmatmul.mubr.f32.gmra.mxu0 %v419
        %v490 = vpop.f32.mrf.mxu0
        %v491 = vadd.f32 0.0, %v490
        %v492 = vpop.f32.mrf.mxu0
        %493 = vdwg.mxu0
        %v495 = vsel %vm341, %v331, 0
        %v498 = vsel %vm341, %v335, 0
        %500 = vmatprep.subr.mxu0 0.0
        %501 = vmatpush1.xpose.msra.mxu0 0.0
        %502 = vmatprep.subr.mxu0 0.0
        %503 = vmatpush1.xpose.msra.mxu0 0.0
        %504 = vmatprep.subr.mxu0 0.0
        %505 = vmatpush1.xpose.msra.mxu0 0.0
        %506 = vmatprep.subr.mxu0 0.0
        %507 = vmatpush1.xpose.msra.mxu0 0.0
        %508 = vmatprep.subr.mxu0 0.0
        %509 = vmatpush1.xpose.msra.mxu0 0.0
        %510 = vmatprep.subr.mxu0 0.0
        %511 = vmatpush1.xpose.msra.mxu0 0.0
        %512 = vmatprep.subr.mxu0 0.0
        %513 = vmatpush1.xpose.msra.mxu0 0.0
        %514 = vmatprep.subr.mxu0 0.0
        %515 = vmatpush1.xpose.msra.mxu0 0.0
        %516 = vmatprep.subr.mxu0 0.0
        %517 = vmatpush1.xpose.msra.mxu0 0.0
        %518 = vmatprep.subr.mxu0 0.0
        %519 = vmatpush1.xpose.msra.mxu0 0.0
        %520 = vmatprep.subr.mxu0 0.0
        %521 = vmatpush1.xpose.msra.mxu0 0.0
        %522 = vmatprep.subr.mxu0 0.0
        %523 = vmatpush1.xpose.msra.mxu0 0.0
        %524 = vmatprep.subr.mxu0 0.0
        %525 = vmatpush1.xpose.msra.mxu0 0.0
        %526 = vmatprep.subr.mxu0 0.0
        %527 = vmatpush1.xpose.msra.mxu0 0.0
        %528 = vmatprep.subr.mxu0 0.0
        %529 = vmatpush1.xpose.msra.mxu0 0.0
        %530 = vmatprep.subr.mxu0 0.0
        %531 = vmatpush1.xpose.msra.mxu0 %v498
        %532 = vmatprep.subr.mxu0 0.0
        %533 = vmatpush2.xpose.msra.mxu0 0.0
        %534 = vmatprep.subr.mxu0 0.0
        %535 = vmatpush2.xpose.msra.mxu0 0.0
        %536 = vmatprep.subr.mxu0 0.0
        %537 = vmatpush2.xpose.msra.mxu0 0.0
        %538 = vmatprep.subr.mxu0 0.0
        %539 = vmatpush2.xpose.msra.mxu0 0.0
        %540 = vmatprep.subr.mxu0 0.0
        %541 = vmatpush2.xpose.msra.mxu0 0.0
        %542 = vmatprep.subr.mxu0 0.0
        %543 = vmatpush2.xpose.msra.mxu0 0.0
        %544 = vmatprep.subr.mxu0 0.0
        %545 = vmatpush2.xpose.msra.mxu0 0.0
        %546 = vmatprep.subr.mxu0 0.0
        %547 = vmatpush2.xpose.msra.mxu0 0.0
        %548 = vmatprep.subr.mxu0 0.0
        %549 = vmatpush2.xpose.msra.mxu0 0.0
        %550 = vmatprep.subr.mxu0 0.0
        %551 = vmatpush2.xpose.msra.mxu0 0.0
        %552 = vmatprep.subr.mxu0 0.0
        %553 = vmatpush2.xpose.msra.mxu0 0.0
        %554 = vmatprep.subr.mxu0 0.0
        %555 = vmatpush2.xpose.msra.mxu0 0.0
        %556 = vmatprep.subr.mxu0 0.0
        %557 = vmatpush2.xpose.msra.mxu0 0.0
        %558 = vmatprep.subr.mxu0 0.0
        %559 = vmatpush2.xpose.msra.mxu0 0.0
        %560 = vmatprep.subr.mxu0 0.0
        %561 = vmatpush2.xpose.msra.mxu0 0.0
        %562 = vmatprep.subr.mxu0 0.0
        %563 = vmatpush2.xpose.msra.mxu0 0.0
        %564 = vmatprep.mubr.f32.mxu0 0.0
        %565 = vmatmul.mubr.f32.gmra.mxu0 %v495
        %v566 = vpop.f32.mrf.mxu0
        %v567 = vadd.f32 0.0, %v566
        %v568 = vpop.f32.mrf.mxu0
        %569 = vdwg.mxu0
        %v571 = vsel %vm341, %v332, 0
        %v574 = vsel %vm341, %v336, 0
        %576 = vmatprep.subr.mxu0 0.0
        %577 = vmatpush1.xpose.msra.mxu0 0.0
        %578 = vmatprep.subr.mxu0 0.0
        %579 = vmatpush1.xpose.msra.mxu0 0.0
        %580 = vmatprep.subr.mxu0 0.0
        %581 = vmatpush1.xpose.msra.mxu0 0.0
        %582 = vmatprep.subr.mxu0 0.0
        %583 = vmatpush1.xpose.msra.mxu0 0.0
        %584 = vmatprep.subr.mxu0 0.0
        %585 = vmatpush1.xpose.msra.mxu0 0.0
        %586 = vmatprep.subr.mxu0 0.0
        %587 = vmatpush1.xpose.msra.mxu0 0.0
        %588 = vmatprep.subr.mxu0 0.0
        %589 = vmatpush1.xpose.msra.mxu0 0.0
        %590 = vmatprep.subr.mxu0 0.0
        %591 = vmatpush1.xpose.msra.mxu0 0.0
        %592 = vmatprep.subr.mxu0 0.0
        %593 = vmatpush1.xpose.msra.mxu0 0.0
        %594 = vmatprep.subr.mxu0 0.0
        %595 = vmatpush1.xpose.msra.mxu0 0.0
        %596 = vmatprep.subr.mxu0 0.0
        %597 = vmatpush1.xpose.msra.mxu0 0.0
        %598 = vmatprep.subr.mxu0 0.0
        %599 = vmatpush1.xpose.msra.mxu0 0.0
        %600 = vmatprep.subr.mxu0 0.0
        %601 = vmatpush1.xpose.msra.mxu0 0.0
        %602 = vmatprep.subr.mxu0 0.0
        %603 = vmatpush1.xpose.msra.mxu0 0.0
        %604 = vmatprep.subr.mxu0 0.0
        %605 = vmatpush1.xpose.msra.mxu0 0.0
        %606 = vmatprep.subr.mxu0 0.0
        %607 = vmatpush1.xpose.msra.mxu0 %v574
        %608 = vmatprep.subr.mxu0 0.0
        %609 = vmatpush2.xpose.msra.mxu0 0.0
        %610 = vmatprep.subr.mxu0 0.0
        %611 = vmatpush2.xpose.msra.mxu0 0.0
        %612 = vmatprep.subr.mxu0 0.0
        %613 = vmatpush2.xpose.msra.mxu0 0.0
        %614 = vmatprep.subr.mxu0 0.0
        %615 = vmatpush2.xpose.msra.mxu0 0.0
        %616 = vmatprep.subr.mxu0 0.0
        %617 = vmatpush2.xpose.msra.mxu0 0.0
        %618 = vmatprep.subr.mxu0 0.0
        %619 = vmatpush2.xpose.msra.mxu0 0.0
        %620 = vmatprep.subr.mxu0 0.0
        %621 = vmatpush2.xpose.msra.mxu0 0.0
        %622 = vmatprep.subr.mxu0 0.0
        %623 = vmatpush2.xpose.msra.mxu0 0.0
        %624 = vmatprep.subr.mxu0 0.0
        %625 = vmatpush2.xpose.msra.mxu0 0.0
        %626 = vmatprep.subr.mxu0 0.0
        %627 = vmatpush2.xpose.msra.mxu0 0.0
        %628 = vmatprep.subr.mxu0 0.0
        %629 = vmatpush2.xpose.msra.mxu0 0.0
        %630 = vmatprep.subr.mxu0 0.0
        %631 = vmatpush2.xpose.msra.mxu0 0.0
        %632 = vmatprep.subr.mxu0 0.0
        %633 = vmatpush2.xpose.msra.mxu0 0.0
        %634 = vmatprep.subr.mxu0 0.0
        %635 = vmatpush2.xpose.msra.mxu0 0.0
        %636 = vmatprep.subr.mxu0 0.0
        %637 = vmatpush2.xpose.msra.mxu0 0.0
        %638 = vmatprep.subr.mxu0 0.0
        %639 = vmatpush2.xpose.msra.mxu0 0.0
        %640 = vmatprep.mubr.f32.mxu0 0.0
        %641 = vmatmul.mubr.f32.gmra.mxu0 %v571
        %v642 = vpop.f32.mrf.mxu0
        %v643 = vadd.f32 0.0, %v642
        %v644 = vpop.f32.mrf.mxu0
        %645 = vdwg.mxu0
        %v646 = vld [vmem:[#allocation2] sm:$0xff]
        %v647 = vld [vmem:[#allocation2 + $0x8] sm:$0xff]
        %v648 = vld [vmem:[#allocation2 + $0x10] sm:$0xff]
        %v649 = vld [vmem:[#allocation2 + $0x18] sm:$0xff]
        %vm650 = vcmask 64512
        %v651 = vsel %vm650, %v415, -inf
        %652 = vmax.xlane.f32.xlu0 %v651
        %v653 = vpop.xlane.xlu0 %652
        %v654 = vsel %vm650, %v491, -inf
        %655 = vmax.xlane.f32.xlu0 %v654
        %v656 = vpop.xlane.xlu0 %655
        %v657 = vsel %vm650, %v567, -inf
        %658 = vmax.xlane.f32.xlu0 %v657
        %v659 = vpop.xlane.xlu0 %658
        %v660 = vsel %vm650, %v643, -inf
        %661 = vmax.xlane.f32.xlu0 %v660
        %v662 = vpop.xlane.xlu0 %661
        %v663 = vmax.f32 %v646, %v653
        %v664 = vmax.f32 %v647, %v656
        %v665 = vmax.f32 %v648, %v659
        %v666 = vmax.f32 %v649, %v662
        %v667 = vsub.f32 %v646, %v663
        %v668 = vsub.f32 %v647, %v664
        %v669 = vsub.f32 %v648, %v665
        %v670 = vsub.f32 %v649, %v666
        %v671 = vpow.pop %v667
        %v672 = vpow.pop %v668
        %v673 = vpow.pop %v669
        %v674 = vpow.pop %v670
        %676 = vset.pattern.permute.xlu0 0
        %677 = vperm.xlu0 %676, %v663
        %v678 = vpop.permute.xlu0 %677
        %681 = vset.pattern.permute.xlu0 0
        %682 = vperm.xlu0 %681, %v664
        %v683 = vpop.permute.xlu0 %682
        %686 = vset.pattern.permute.xlu0 0
        %687 = vperm.xlu0 %686, %v665
        %v688 = vpop.permute.xlu0 %687
        %691 = vset.pattern.permute.xlu0 0
        %692 = vperm.xlu0 %691, %v666
        %v693 = vpop.permute.xlu0 %692
        %v695 = vsub.f32 %v415, %v678
        %v696 = vsub.f32 %v491, %v683
        %v697 = vsub.f32 %v567, %v688
        %v698 = vsub.f32 %v643, %v693
        %v699 = vpow.pop %v695
        %v700 = vpow.pop %v696
        %v701 = vpow.pop %v697
        %v702 = vpow.pop %v698
        %v703 = vld [vmem:[#allocation3] sm:$0xff]
        %v704 = vld [vmem:[#allocation3 + $0x8] sm:$0xff]
        %v705 = vld [vmem:[#allocation3 + $0x10] sm:$0xff]
        %v706 = vld [vmem:[#allocation3 + $0x18] sm:$0xff]
        %v707 = vmul.f32 %v671, %v703
        %v708 = vmul.f32 %v672, %v704
        %v709 = vmul.f32 %v673, %v705
        %v710 = vmul.f32 %v674, %v706
        %v711 = vsel %vm650, %v699, 0.0
        %712 = vadd.xlane.f32.xlu0 %v711
        %v713 = vpop.xlane.xlu0 %712
        %v714 = vsel %vm650, %v700, 0.0
        %715 = vadd.xlane.f32.xlu0 %v714
        %v716 = vpop.xlane.xlu0 %715
        %v717 = vsel %vm650, %v701, 0.0
        %718 = vadd.xlane.f32.xlu0 %v717
        %v719 = vpop.xlane.xlu0 %718
        %v720 = vsel %vm650, %v702, 0.0
        %721 = vadd.xlane.f32.xlu0 %v720
        %v722 = vpop.xlane.xlu0 %721
        %v723 = vadd.f32 %v707, %v713
        %v724 = vadd.f32 %v708, %v716
        %v725 = vadd.f32 %v709, %v719
        %v726 = vadd.f32 %v710, %v722
        %727 = vst [vmem:[#allocation3] sm:$0xff] %v723
        %728 = vst [vmem:[#allocation3 + $0x8] sm:$0xff] %v724
        %729 = vst [vmem:[#allocation3 + $0x10] sm:$0xff] %v725
        %730 = vst [vmem:[#allocation3 + $0x18] sm:$0xff] %v726
        %v732 = vsel %vm650, %v699, 0
        %734 = vmatprep.subr.mxu0 0.0
        %735 = vmatpush1.msra.mxu0 0.0
        %736 = vmatprep.subr.mxu0 0.0
        %737 = vmatpush1.msra.mxu0 0.0
        %738 = vmatprep.subr.mxu0 0.0
        %739 = vmatpush1.msra.mxu0 0.0
        %740 = vmatprep.subr.mxu0 0.0
        %741 = vmatpush1.msra.mxu0 0.0
        %742 = vmatprep.subr.mxu0 0.0
        %743 = vmatpush1.msra.mxu0 0.0
        %744 = vmatprep.subr.mxu0 0.0
        %745 = vmatpush1.msra.mxu0 0.0
        %746 = vmatprep.subr.mxu0 0.0
        %747 = vmatpush1.msra.mxu0 0.0
        %748 = vmatprep.subr.mxu0 0.0
        %749 = vmatpush1.msra.mxu0 0.0
        %750 = vmatprep.subr.mxu0 0.0
        %751 = vmatpush1.msra.mxu0 0.0
        %752 = vmatprep.subr.mxu0 0.0
        %753 = vmatpush1.msra.mxu0 0.0
        %754 = vmatprep.subr.mxu0 0.0
        %755 = vmatpush1.msra.mxu0 0.0
        %756 = vmatprep.subr.mxu0 0.0
        %757 = vmatpush1.msra.mxu0 0.0
        %758 = vmatprep.subr.mxu0 0.0
        %759 = vmatpush1.msra.mxu0 0.0
        %760 = vmatprep.subr.mxu0 0.0
        %761 = vmatpush1.msra.mxu0 0.0
        %762 = vmatprep.subr.mxu0 0.0
        %763 = vmatpush1.msra.mxu0 0.0
        %764 = vmatprep.subr.mxu0 0.0
        %765 = vmatpush1.msra.mxu0 %v337
        %766 = vmatprep.subr.mxu0 0.0
        %767 = vmatpush2.msra.mxu0 0.0
        %768 = vmatprep.subr.mxu0 0.0
        %769 = vmatpush2.msra.mxu0 0.0
        %770 = vmatprep.subr.mxu0 0.0
        %771 = vmatpush2.msra.mxu0 0.0
        %772 = vmatprep.subr.mxu0 0.0
        %773 = vmatpush2.msra.mxu0 0.0
        %774 = vmatprep.subr.mxu0 0.0
        %775 = vmatpush2.msra.mxu0 0.0
        %776 = vmatprep.subr.mxu0 0.0
        %777 = vmatpush2.msra.mxu0 0.0
        %778 = vmatprep.subr.mxu0 0.0
        %779 = vmatpush2.msra.mxu0 0.0
        %780 = vmatprep.subr.mxu0 0.0
        %781 = vmatpush2.msra.mxu0 0.0
        %782 = vmatprep.subr.mxu0 0.0
        %783 = vmatpush2.msra.mxu0 0.0
        %784 = vmatprep.subr.mxu0 0.0
        %785 = vmatpush2.msra.mxu0 0.0
        %786 = vmatprep.subr.mxu0 0.0
        %787 = vmatpush2.msra.mxu0 0.0
        %788 = vmatprep.subr.mxu0 0.0
        %789 = vmatpush2.msra.mxu0 0.0
        %790 = vmatprep.subr.mxu0 0.0
        %791 = vmatpush2.msra.mxu0 0.0
        %792 = vmatprep.subr.mxu0 0.0
        %793 = vmatpush2.msra.mxu0 0.0
        %794 = vmatprep.subr.mxu0 0.0
        %795 = vmatpush2.msra.mxu0 0.0
        %796 = vmatprep.subr.mxu0 0.0
        %797 = vmatpush2.msra.mxu0 0.0
        %798 = vmatprep.mubr.f32.mxu0 0.0
        %799 = vmatmul.mubr.f32.gmra.mxu0 %v732
        %v800 = vpop.f32.mrf.mxu0
        %v801 = vadd.f32 0.0, %v800
        %v802 = vpop.f32.mrf.mxu0
        %803 = vdwg.mxu0
        %v805 = vsel %vm650, %v700, 0
        %807 = vmatprep.subr.mxu0 0.0
        %808 = vmatpush1.msra.mxu0 0.0
        %809 = vmatprep.subr.mxu0 0.0
        %810 = vmatpush1.msra.mxu0 0.0
        %811 = vmatprep.subr.mxu0 0.0
        %812 = vmatpush1.msra.mxu0 0.0
        %813 = vmatprep.subr.mxu0 0.0
        %814 = vmatpush1.msra.mxu0 0.0
        %815 = vmatprep.subr.mxu0 0.0
        %816 = vmatpush1.msra.mxu0 0.0
        %817 = vmatprep.subr.mxu0 0.0
        %818 = vmatpush1.msra.mxu0 0.0
        %819 = vmatprep.subr.mxu0 0.0
        %820 = vmatpush1.msra.mxu0 0.0
        %821 = vmatprep.subr.mxu0 0.0
        %822 = vmatpush1.msra.mxu0 0.0
        %823 = vmatprep.subr.mxu0 0.0
        %824 = vmatpush1.msra.mxu0 0.0
        %825 = vmatprep.subr.mxu0 0.0
        %826 = vmatpush1.msra.mxu0 0.0
        %827 = vmatprep.subr.mxu0 0.0
        %828 = vmatpush1.msra.mxu0 0.0
        %829 = vmatprep.subr.mxu0 0.0
        %830 = vmatpush1.msra.mxu0 0.0
        %831 = vmatprep.subr.mxu0 0.0
        %832 = vmatpush1.msra.mxu0 0.0
        %833 = vmatprep.subr.mxu0 0.0
        %834 = vmatpush1.msra.mxu0 0.0
        %835 = vmatprep.subr.mxu0 0.0
        %836 = vmatpush1.msra.mxu0 0.0
        %837 = vmatprep.subr.mxu0 0.0
        %838 = vmatpush1.msra.mxu0 %v338
        %839 = vmatprep.subr.mxu0 0.0
        %840 = vmatpush2.msra.mxu0 0.0
        %841 = vmatprep.subr.mxu0 0.0
        %842 = vmatpush2.msra.mxu0 0.0
        %843 = vmatprep.subr.mxu0 0.0
        %844 = vmatpush2.msra.mxu0 0.0
        %845 = vmatprep.subr.mxu0 0.0
        %846 = vmatpush2.msra.mxu0 0.0
        %847 = vmatprep.subr.mxu0 0.0
        %848 = vmatpush2.msra.mxu0 0.0
        %849 = vmatprep.subr.mxu0 0.0
        %850 = vmatpush2.msra.mxu0 0.0
        %851 = vmatprep.subr.mxu0 0.0
        %852 = vmatpush2.msra.mxu0 0.0
        %853 = vmatprep.subr.mxu0 0.0
        %854 = vmatpush2.msra.mxu0 0.0
        %855 = vmatprep.subr.mxu0 0.0
        %856 = vmatpush2.msra.mxu0 0.0
        %857 = vmatprep.subr.mxu0 0.0
        %858 = vmatpush2.msra.mxu0 0.0
        %859 = vmatprep.subr.mxu0 0.0
        %860 = vmatpush2.msra.mxu0 0.0
        %861 = vmatprep.subr.mxu0 0.0
        %862 = vmatpush2.msra.mxu0 0.0
        %863 = vmatprep.subr.mxu0 0.0
        %864 = vmatpush2.msra.mxu0 0.0
        %865 = vmatprep.subr.mxu0 0.0
        %866 = vmatpush2.msra.mxu0 0.0
        %867 = vmatprep.subr.mxu0 0.0
        %868 = vmatpush2.msra.mxu0 0.0
        %869 = vmatprep.subr.mxu0 0.0
        %870 = vmatpush2.msra.mxu0 0.0
        %871 = vmatprep.mubr.f32.mxu0 0.0
        %872 = vmatmul.mubr.f32.gmra.mxu0 %v805
        %v873 = vpop.f32.mrf.mxu0
        %v874 = vadd.f32 0.0, %v873
        %v875 = vpop.f32.mrf.mxu0
        %876 = vdwg.mxu0
        %v878 = vsel %vm650, %v701, 0
        %880 = vmatprep.subr.mxu0 0.0
        %881 = vmatpush1.msra.mxu0 0.0
        %882 = vmatprep.subr.mxu0 0.0
        %883 = vmatpush1.msra.mxu0 0.0
        %884 = vmatprep.subr.mxu0 0.0
        %885 = vmatpush1.msra.mxu0 0.0
        %886 = vmatprep.subr.mxu0 0.0
        %887 = vmatpush1.msra.mxu0 0.0
        %888 = vmatprep.subr.mxu0 0.0
        %889 = vmatpush1.msra.mxu0 0.0
        %890 = vmatprep.subr.mxu0 0.0
        %891 = vmatpush1.msra.mxu0 0.0
        %892 = vmatprep.subr.mxu0 0.0
        %893 = vmatpush1.msra.mxu0 0.0
        %894 = vmatprep.subr.mxu0 0.0
        %895 = vmatpush1.msra.mxu0 0.0
        %896 = vmatprep.subr.mxu0 0.0
        %897 = vmatpush1.msra.mxu0 0.0
        %898 = vmatprep.subr.mxu0 0.0
        %899 = vmatpush1.msra.mxu0 0.0
        %900 = vmatprep.subr.mxu0 0.0
        %901 = vmatpush1.msra.mxu0 0.0
        %902 = vmatprep.subr.mxu0 0.0
        %903 = vmatpush1.msra.mxu0 0.0
        %904 = vmatprep.subr.mxu0 0.0
        %905 = vmatpush1.msra.mxu0 0.0
        %906 = vmatprep.subr.mxu0 0.0
        %907 = vmatpush1.msra.mxu0 0.0
        %908 = vmatprep.subr.mxu0 0.0
        %909 = vmatpush1.msra.mxu0 0.0
        %910 = vmatprep.subr.mxu0 0.0
        %911 = vmatpush1.msra.mxu0 %v339
        %912 = vmatprep.subr.mxu0 0.0
        %913 = vmatpush2.msra.mxu0 0.0
        %914 = vmatprep.subr.mxu0 0.0
        %915 = vmatpush2.msra.mxu0 0.0
        %916 = vmatprep.subr.mxu0 0.0
        %917 = vmatpush2.msra.mxu0 0.0
        %918 = vmatprep.subr.mxu0 0.0
        %919 = vmatpush2.msra.mxu0 0.0
        %920 = vmatprep.subr.mxu0 0.0
        %921 = vmatpush2.msra.mxu0 0.0
        %922 = vmatprep.subr.mxu0 0.0
        %923 = vmatpush2.msra.mxu0 0.0
        %924 = vmatprep.subr.mxu0 0.0
        %925 = vmatpush2.msra.mxu0 0.0
        %926 = vmatprep.subr.mxu0 0.0
        %927 = vmatpush2.msra.mxu0 0.0
        %928 = vmatprep.subr.mxu0 0.0
        %929 = vmatpush2.msra.mxu0 0.0
        %930 = vmatprep.subr.mxu0 0.0
        %931 = vmatpush2.msra.mxu0 0.0
        %932 = vmatprep.subr.mxu0 0.0
        %933 = vmatpush2.msra.mxu0 0.0
        %934 = vmatprep.subr.mxu0 0.0
        %935 = vmatpush2.msra.mxu0 0.0
        %936 = vmatprep.subr.mxu0 0.0
        %937 = vmatpush2.msra.mxu0 0.0
        %938 = vmatprep.subr.mxu0 0.0
        %939 = vmatpush2.msra.mxu0 0.0
        %940 = vmatprep.subr.mxu0 0.0
        %941 = vmatpush2.msra.mxu0 0.0
        %942 = vmatprep.subr.mxu0 0.0
        %943 = vmatpush2.msra.mxu0 0.0
        %944 = vmatprep.mubr.f32.mxu0 0.0
        %945 = vmatmul.mubr.f32.gmra.mxu0 %v878
        %v946 = vpop.f32.mrf.mxu0
        %v947 = vadd.f32 0.0, %v946
        %v948 = vpop.f32.mrf.mxu0
        %949 = vdwg.mxu0
        %v951 = vsel %vm650, %v702, 0
        %953 = vmatprep.subr.mxu0 0.0
        %954 = vmatpush1.msra.mxu0 0.0
        %955 = vmatprep.subr.mxu0 0.0
        %956 = vmatpush1.msra.mxu0 0.0
        %957 = vmatprep.subr.mxu0 0.0
        %958 = vmatpush1.msra.mxu0 0.0
        %959 = vmatprep.subr.mxu0 0.0
        %960 = vmatpush1.msra.mxu0 0.0
        %961 = vmatprep.subr.mxu0 0.0
        %962 = vmatpush1.msra.mxu0 0.0
        %963 = vmatprep.subr.mxu0 0.0
        %964 = vmatpush1.msra.mxu0 0.0
        %965 = vmatprep.subr.mxu0 0.0
        %966 = vmatpush1.msra.mxu0 0.0
        %967 = vmatprep.subr.mxu0 0.0
        %968 = vmatpush1.msra.mxu0 0.0
        %969 = vmatprep.subr.mxu0 0.0
        %970 = vmatpush1.msra.mxu0 0.0
        %971 = vmatprep.subr.mxu0 0.0
        %972 = vmatpush1.msra.mxu0 0.0
        %973 = vmatprep.subr.mxu0 0.0
        %974 = vmatpush1.msra.mxu0 0.0
        %975 = vmatprep.subr.mxu0 0.0
        %976 = vmatpush1.msra.mxu0 0.0
        %977 = vmatprep.subr.mxu0 0.0
        %978 = vmatpush1.msra.mxu0 0.0
        %979 = vmatprep.subr.mxu0 0.0
        %980 = vmatpush1.msra.mxu0 0.0
        %981 = vmatprep.subr.mxu0 0.0
        %982 = vmatpush1.msra.mxu0 0.0
        %983 = vmatprep.subr.mxu0 0.0
        %984 = vmatpush1.msra.mxu0 %v340
        %985 = vmatprep.subr.mxu0 0.0
        %986 = vmatpush2.msra.mxu0 0.0
        %987 = vmatprep.subr.mxu0 0.0
        %988 = vmatpush2.msra.mxu0 0.0
        %989 = vmatprep.subr.mxu0 0.0
        %990 = vmatpush2.msra.mxu0 0.0
        %991 = vmatprep.subr.mxu0 0.0
        %992 = vmatpush2.msra.mxu0 0.0
        %993 = vmatprep.subr.mxu0 0.0
        %994 = vmatpush2.msra.mxu0 0.0
        %995 = vmatprep.subr.mxu0 0.0
        %996 = vmatpush2.msra.mxu0 0.0
        %997 = vmatprep.subr.mxu0 0.0
        %998 = vmatpush2.msra.mxu0 0.0
        %999 = vmatprep.subr.mxu0 0.0
        %1000 = vmatpush2.msra.mxu0 0.0
        %1001 = vmatprep.subr.mxu0 0.0
        %1002 = vmatpush2.msra.mxu0 0.0
        %1003 = vmatprep.subr.mxu0 0.0
        %1004 = vmatpush2.msra.mxu0 0.0
        %1005 = vmatprep.subr.mxu0 0.0
        %1006 = vmatpush2.msra.mxu0 0.0
        %1007 = vmatprep.subr.mxu0 0.0
        %1008 = vmatpush2.msra.mxu0 0.0
        %1009 = vmatprep.subr.mxu0 0.0
        %1010 = vmatpush2.msra.mxu0 0.0
        %1011 = vmatprep.subr.mxu0 0.0
        %1012 = vmatpush2.msra.mxu0 0.0
        %1013 = vmatprep.subr.mxu0 0.0
        %1014 = vmatpush2.msra.mxu0 0.0
        %1015 = vmatprep.subr.mxu0 0.0
        %1016 = vmatpush2.msra.mxu0 0.0
        %1017 = vmatprep.mubr.f32.mxu0 0.0
        %1018 = vmatmul.mubr.f32.gmra.mxu0 %v951
        %v1019 = vpop.f32.mrf.mxu0
        %v1020 = vadd.f32 0.0, %v1019
        %v1021 = vpop.f32.mrf.mxu0
        %1022 = vdwg.mxu0
        %v1023 = vld [vmem:[#allocation4] sm:$0xff]
        %v1024 = vld [vmem:[#allocation4 + $0x8] sm:$0xff]
        %v1025 = vld [vmem:[#allocation4 + $0x10] sm:$0xff]
        %v1026 = vld [vmem:[#allocation4 + $0x18] sm:$0xff]
        %v1027 = vmul.f32 %v671, %v1023
        %v1028 = vmul.f32 %v672, %v1024
        %v1029 = vmul.f32 %v673, %v1025
        %v1030 = vmul.f32 %v674, %v1026
        %v1031 = vadd.f32 %v1027, %v801
        %v1032 = vadd.f32 %v1028, %v874
        %v1033 = vadd.f32 %v1029, %v947
        %v1034 = vadd.f32 %v1030, %v1020
        %1035 = vst.msk [vmem:[#allocation4] sm:$0xff] %vm341, %v1031
        %1036 = vst.msk [vmem:[#allocation4 + $0x8] sm:$0xff] %vm341, %v1032
        %1037 = vst.msk [vmem:[#allocation4 + $0x10] sm:$0xff] %vm341, %v1033
        %1038 = vst.msk [vmem:[#allocation4 + $0x18] sm:$0xff] %vm341, %v1034
        %1039 = vst [vmem:[#allocation2] sm:$0xff] %v663
        %1040 = vst [vmem:[#allocation2 + $0x8] sm:$0xff] %v664
        %1041 = vst [vmem:[#allocation2 + $0x10] sm:$0xff] %v665
        %1042 = vst [vmem:[#allocation2 + $0x18] sm:$0xff] %v666
        // Predicated region
        $region49: #{tpu_custom_call.1} parent=31 // pred_check
          %p1043 = pneg %p300
        $region50: #{tpu_custom_call.1} parent=31 // pred_check_branch
          %1045 = sbr.rel (%p1043) target = $region52
        $region51: #{tpu_custom_call.1} parent=31 // pred_region
          %v1046 = vld [vmem:[#allocation3] sm:$0xff]
          %v1047 = vld [vmem:[#allocation3 + $0x8] sm:$0xff]
          %v1048 = vld [vmem:[#allocation3 + $0x10] sm:$0xff]
          %v1049 = vld [vmem:[#allocation3 + $0x18] sm:$0xff]
          %v1050 = vrcp.pop %v1046
          %v1051 = vrcp.pop %v1047
          %v1052 = vrcp.pop %v1048
          %v1053 = vrcp.pop %v1049
          %v1054 = vmul.f32 %v1046, %v1050
          %v1055 = vmul.f32 %v1047, %v1051
          %v1056 = vmul.f32 %v1048, %v1052
          %v1057 = vmul.f32 %v1049, %v1053
          %v1058 = vsub.f32 2.0, %v1054
          %v1059 = vsub.f32 2.0, %v1055
          %v1060 = vsub.f32 2.0, %v1056
          %v1061 = vsub.f32 2.0, %v1057
          %v1062 = vmul.f32 %v1050, %v1058
          %v1063 = vmul.f32 %v1051, %v1059
          %v1064 = vmul.f32 %v1052, %v1060
          %v1065 = vmul.f32 %v1053, %v1061
          %v1066 = vld [vmem:[#allocation4] sm:$0xff]
          %v1067 = vld [vmem:[#allocation4 + $0x8] sm:$0xff]
          %v1068 = vld [vmem:[#allocation4 + $0x10] sm:$0xff]
          %v1069 = vld [vmem:[#allocation4 + $0x18] sm:$0xff]
          %v1070 = vmul.f32 %v1066, %v1062
          %v1071 = vmul.f32 %v1067, %v1063
          %v1072 = vmul.f32 %v1068, %v1064
          %v1073 = vmul.f32 %v1069, %v1065
          %1074 = vst.msk [vmem:[%s295] sm:$0xff] %vm341, %v1070
          %1075 = vst.msk [vmem:[%s295 + $0x8] sm:$0xff] %vm341, %v1071
          %1076 = vst.msk [vmem:[%s295 + $0x10] sm:$0xff] %vm341, %v1072
          %1077 = vst.msk [vmem:[%s295 + $0x18] sm:$0xff] %vm341, %v1073
        $region52: #{tpu_custom_call.1} parent=31 // pred_fallthru
          _
        %s1078 = sand.u32 %s136, 1
        %s1079 = scalar_lea.sflag [#allocation8], %s1078
        %s1080 = sand.u32 %s136, 1
        %s1081 = smul.addr %s1080, 32
        %s1082 = scalar_lea.vmem [#allocation12], %s1081
        // Predicated region
        $region53: #{tpu_custom_call.1} parent=31 // pred_check
          %p1083 = pneg %p146
        $region54: #{tpu_custom_call.1} parent=31 // pred_check_branch
          %1085 = sbr.rel (%p1083) target = $region56
        $region55: #{tpu_custom_call.1} parent=31 // pred_region
          %s1086 = smul.u32 4, %s28
          %s1088 = ssub.s32 512, 512
          %1089 = vsyncadd %s1079, %s1088
          %s1090 = sadd.s32 %s29, %s1086
          %s1091 = smul.addr %s1090, 128
          %s1092 = scalar_lea.hbm %s3, %s1091
          %s1093 = sshll.u32 %s1082, 4
          %s1094 = int_to_ptr.vmem [resolvable:$true] %s1093
          %1099 = dma.vmem_to_hbm [thread:$0]  %s1094, 512, %s1092, %s1079, 128, 128, 8
        $region56: #{tpu_custom_call.1} parent=31 // pred_fallthru
          _
      $region32: #{tpu_custom_call.1} parent=5 // pred_fallthru
        _
      %p1100 = scmp.le.s32.totalorder 2, %s18
      // Predicated region
      $region57: #{tpu_custom_call.1} parent=5 // pred_check
        %p1101 = pneg %p1100
      $region58: #{tpu_custom_call.1} parent=5 // pred_check_branch
        %1103 = sbr.rel (%p1101) target = $region60
      $region59: #{tpu_custom_call.1} parent=5 // pred_region
        %s1104 = ssub.s32 %s18, 2
        // Predicated region
        $region61: #{tpu_custom_call.1} parent=59 // pred_check
          %p1105 = pneg %p152
        $region62: #{tpu_custom_call.1} parent=59 // pred_check_branch
          %1107 = sbr.rel (%p1105) target = $region64
        $region63: #{tpu_custom_call.1} parent=59 // pred_region
          %s1108 = sand.u32 %s137, 1
          %s1109 = scalar_lea.sflag [#allocation8], %s1108
          %s1110 = sand.u32 %s137, 1
          %s1111 = smul.addr %s1110, 32
          %s1112 = scalar_lea.vmem [#allocation12], %s1111
          %1113 = dma.done %s1109, 512
        $region64: #{tpu_custom_call.1} parent=59 // pred_fallthru
          _
      $region60: #{tpu_custom_call.1} parent=5 // pred_fallthru
        _
    $region6: #{tpu_custom_call.1} parent=1 // loop_footer
      %s22 = sadd.s32 1, %s18
    $region7: #{tpu_custom_call.1} parent=1 // loop_footer_branch
      %17 = sbr.rel target = $region3
    $region8: #{tpu_custom_call.1} parent=1 // loop_exit
      _
    %1114 = vsyncpa [#allocation7], 1
    %s1115 = scalar_lea.sflag [#allocation7], 1
    %1116 = vsyncpa %s1115, 1
    %1117 = vsyncpa [#allocation10], 1
    %s1118 = scalar_lea.sflag [#allocation10], 1
    %1119 = vsyncpa %s1118, 1
    %1120 = vsyncpa [#allocation8], 1
    %s1121 = scalar_lea.sflag [#allocation8], 1
    %1122 = vsyncpa %s1121, 1

</llo_original>
